<compile_context>
chip_gen: v7x
topology: tpu7x:2x2x1
jax: 0.10.0
libtpu: 0.0.40
codegen_flags: <defaults>
</compile_context>

<pallas_src>
import functools

import jax
import jax.numpy as jnp
from jax import lax
from jax.experimental import pallas as pl
from jax.experimental.pallas import tpu as pltpu


def _round_up(x, m):
    return ((x + m - 1) // m) * m


def _default_vmem_budget_bytes():
    # Generation-aware VMEM budget: ~55% of physical VMEM, capped.
    #   v5e / v6e: 128 MiB physical -> ~70 MiB budget
    #   v7x      :  64 MiB physical -> ~35 MiB budget
    try:
        cap = pltpu.get_tpu_info().vmem_capacity_bytes
        return int(min(cap * 0.55, 96 * 1024 * 1024))
    except Exception:
        return 24 * 1024 * 1024


def _head_kernel(cls_ref, patch_ref, w_cls_ref, w_mean_ref, b_ref, o_ref,
                 sum_ref, *, n_tokens, tn, mask_tail):
    # cls_ref:    (TB, D)      native dtype cls tokens
    # patch_ref:  (TB, TN, D)  native dtype patch-token block
    # w_cls_ref:  (Cp, D)      f32, cls half of nn.Linear weight (padded on C)
    # w_mean_ref: (Cp, D)      f32, mean half, pre-scaled by 1/N
    # b_ref:      (1, Cp)      f32
    # o_ref:      (TB, Cp)     f32
    # sum_ref:    (TB, D)      f32 running token sum (scratch)
    k = pl.program_id(1)

    @pl.when(k == 0)
    def _init():
        sum_ref[...] = jnp.zeros_like(sum_ref)

    block = patch_ref[...]                                     # (TB, TN, D)
    if mask_tail:
        # Last token block is partial: zero the out-of-range token rows so the
        # garbage in the clamped DMA region cannot pollute the sum.
        tok = k * tn + lax.broadcasted_iota(jnp.int32, (tn, 1), 0)
        block = jnp.where(tok < n_tokens, block, jnp.zeros((), block.dtype))
    # f32 accumulation of the token sum, no full f32 copy of the block.
    sum_ref[...] += jnp.sum(block, axis=1, dtype=jnp.float32)

    @pl.when(k == pl.num_programs(1) - 1)
    def _finalize():
        contract = (((1,), (1,)), ((), ()))                    # x @ W.T, no transpose
        logits = lax.dot_general(
            cls_ref[...].astype(jnp.float32), w_cls_ref[...],
            contract, preferred_element_type=jnp.float32)      # (TB, Cp)
        logits = logits + lax.dot_general(
            sum_ref[...], w_mean_ref[...],                     # mean half pre-scaled by 1/N
            contract, preferred_element_type=jnp.float32)
        o_ref[...] = (logits + b_ref[...]).astype(o_ref.dtype)


def linear_classifier_head(cls_token, patch_tokens, weight, bias,
                           *, vmem_budget_bytes=None):
    """Pallas implementation of the LinearClassifierModel head.

    Args:
      cls_token:    (B, D)    backbone cls tokens (any float dtype; streamed as-is)
      patch_tokens: (B, N, D) backbone patch tokens (any float dtype; streamed as-is)
      weight:       (C, 2D)   PyTorch nn.Linear weight layout (NOT transposed)
      bias:         (C,)
    Returns:
      logits: (B, C) float32
    """
    B, D = cls_token.shape
    _, N, _ = patch_tokens.shape
    C = weight.shape[0]
    assert weight.shape == (C, 2 * D) and patch_tokens.shape[0] == B
    assert bias.shape == (C,)

    if vmem_budget_bytes is None:
        vmem_budget_bytes = _default_vmem_budget_bytes()

    Cp = _round_up(C, 128)                    # lane-dense output store / MXU width
    Bp8 = _round_up(B, 8)
    isz = jnp.dtype(patch_tokens.dtype).itemsize

    # --- static head params: pad classes axis, split + pre-scale the halves --
    # NOTE: in a real model this prep runs once outside the hot path and is
    # cached (the head parameters are static).
    w = weight.astype(jnp.float32)
    w_cls = jnp.zeros((Cp, D), jnp.float32).at[:C, :].set(w[:, :D])
    w_mean = jnp.zeros((Cp, D), jnp.float32).at[:C, :].set(w[:, D:] * (1.0 / N))
    b_p = jnp.zeros((1, Cp), jnp.float32).at[0, :C].set(bias.astype(jnp.float32))

    # --- VMEM-budget-driven tile selection ------------------------------------
    resident = (2 * Cp * D + Cp) * 4          # w_cls + w_mean + bias (single-buffered)
    # TODO(synk): very large heads (C*D*8B comparable to VMEM) would also need a
    # classes-axis grid; not implemented here.
    stream_budget = max(vmem_budget_bytes - resident, 4 * 1024 * 1024)

    # Token tile: full N if an 8-row double-buffered patch block fits in half
    # the streaming budget, otherwise the largest multiple of 8 that does.
    tn_cap = max(8, (stream_budget // 2) // (2 * 8 * D * isz) // 8 * 8)
    TN = N if N <= tn_cap else tn_cap
    mask_tail = (N % TN) != 0

    # Batch tile: as large as the budget allows, multiple of 8; keep >=2 batch
    # blocks when possible so the "parallel" axis can feed both TCs on v7x
    # (harmless on single-TC v5e/v6e).  No padding copy of the big tensors is
    # made: the final partial batch block is handled by Pallas (clamped input
    # DMA, out-of-range output rows dropped).
    per_row = (2 * TN * D + 2 * D) * isz + 2 * Cp * 4 + D * 4
    TB = max(8, min(Bp8, stream_budget // per_row // 8 * 8))
    if Bp8 >= 16:
        TB = min(TB, _round_up(Bp8 // 2, 8))

    grid = (pl.cdiv(Bp8, TB), pl.cdiv(N, TN))

    kernel = functools.partial(_head_kernel, n_tokens=N, tn=TN,
                               mask_tail=mask_tail)

    cost = pl.CostEstimate(
        flops=2 * B * (2 * D) * Cp + B * N * D,
        transcendentals=0,
        bytes_accessed=isz * (B * N * D + B * D)
        + 4 * (2 * Cp * D + Cp + B * Cp),
    )

    out_p = pl.pallas_call(
        kernel,
        out_shape=jax.ShapeDtypeStruct((B, Cp), jnp.float32),
        grid_spec=pltpu.PrefetchScalarGridSpec(
            num_scalar_prefetch=0,
            grid=grid,
            in_specs=[
                pl.BlockSpec((TB, D), lambda i, k: (i, 0)),
                pl.BlockSpec((TB, TN, D), lambda i, k: (i, k, 0)),
                pl.BlockSpec((Cp, D), lambda i, k: (0, 0),
                             pipeline_mode=pl.Buffered(1)),      # VMEM-resident
                pl.BlockSpec((Cp, D), lambda i, k: (0, 0),
                             pipeline_mode=pl.Buffered(1)),      # VMEM-resident
                pl.BlockSpec((1, Cp), lambda i, k: (0, 0),
                             pipeline_mode=pl.Buffered(1)),      # VMEM-resident
            ],
            out_specs=pl.BlockSpec((TB, Cp), lambda i, k: (i, 0)),
            scratch_shapes=[pltpu.VMEM((TB, D), jnp.float32)],
        ),
        compiler_params=pltpu.CompilerParams(
            dimension_semantics=("parallel", "arbitrary"),
            vmem_limit_bytes=int(vmem_budget_bytes + (8 << 20)),
        ),
        cost_estimate=cost,
    )(cls_token, patch_tokens, w_cls, w_mean, b_p)

    return out_p[:, :C]


if __name__ == "__main__":
    # Small shapes consistent with the module's forward:
    #   embed_dim D = 32, num patch tokens N = 8, batch B = 2, num_classes = 10
    B, N, D, C = 2, 8, 32, 10

    key = jax.random.PRNGKey(0)
    k_cls, k_patch, k_w, k_b = jax.random.split(key, 4)

    # Synthetic backbone outputs (stand-in for model(x, is_training=True)).
    cls_token = jax.random.normal(k_cls, (B, D), dtype=jnp.float32)
    patch_tokens = jax.random.normal(k_patch, (B, N, D), dtype=jnp.float32)

    # Deterministic nn.Linear(2D -> C) init: uniform(+-1/sqrt(fan_in)).
    fan_in = 2 * D
    bound = 1.0 / (fan_in ** 0.5)
    weight = jax.random.uniform(k_w, (C, 2 * D), jnp.float32, -bound, bound)
    bias = jax.random.uniform(k_b, (C,), jnp.float32, -bound, bound)

    out = linear_classifier_head(cls_token, patch_tokens, weight, bias)
    out = jax.block_until_ready(out)

    # Reference check in plain JAX (same semantics as the PyTorch forward).
    ref = jnp.concatenate([cls_token, patch_tokens.mean(axis=1)], axis=1) @ weight.T + bias
    assert out.shape == (B, C)
    assert jnp.allclose(out, ref, atol=1e-4, rtol=1e-4), "mismatch vs reference"

    print("KERNEL_OK")
</pallas_src>

<mosaic_0001>
module attributes {stable_mosaic.version = 11 : i64} {
  func.func @_head_kernel(%arg0: i32, %arg1: i32, %arg2: memref<8x32xf32, #tpu.memory_space<vmem>>, %arg3: memref<8x8x32xf32, #tpu.memory_space<vmem>>, %arg4: memref<128x32xf32, #tpu.memory_space<vmem>>, %arg5: memref<128x32xf32, #tpu.memory_space<vmem>>, %arg6: memref<1x128xf32, #tpu.memory_space<vmem>>, %arg7: memref<8x128xf32, #tpu.memory_space<vmem>>, %arg8: memref<8x32xf32, #tpu.memory_space<vmem>>) attributes {dimension_semantics = [#tpu.dimension_semantics<parallel>, #tpu.dimension_semantics<arbitrary>], iteration_bounds = array<i64: 1, 1>, scalar_prefetch = 0 : i64, scratch_operands = 1 : i64, tpu.core_type = #tpu.core_type<tc>, window_params = [{transform_indices = @transform_0, window_bounds = array<i64: 8, 32>}, {transform_indices = @transform_1, window_bounds = array<i64: 8, 8, 32>}, {pipeline_mode = #tpu.pipeline_mode<synchronous>, transform_indices = @transform_2, window_bounds = array<i64: 128, 32>}, {pipeline_mode = #tpu.pipeline_mode<synchronous>, transform_indices = @transform_3, window_bounds = array<i64: 128, 32>}, {pipeline_mode = #tpu.pipeline_mode<synchronous>, transform_indices = @transform_4, window_bounds = array<i64: 1, 128>}, {transform_indices = @transform_5, window_bounds = array<i64: 8, 128>}]} {
    %c0_i32 = arith.constant 0 : i32
    %0 = arith.cmpi eq, %arg1, %c0_i32 : i32
    %1 = arith.extui %0 : i1 to i32
    %c0_i32_0 = arith.constant 0 : i32
    %2 = arith.cmpi ne, %1, %c0_i32_0 : i32
    scf.if %2 {
      %cst_9 = arith.constant 0.000000e+00 : f32
      %11 = vector.broadcast %cst_9 : f32 to vector<8x32xf32>
      %c0_10 = arith.constant 0 : index
      %c0_11 = arith.constant 0 : index
      %12 = vector.load %arg8[%c0_10, %c0_11] : memref<8x32xf32, #tpu.memory_space<vmem>>, vector<8x32xf32>
      tpu.vector_store %arg8[%c0_10, %c0_11], %11 {strides = array<i32>} : memref<8x32xf32, #tpu.memory_space<vmem>>, vector<8x32xf32>,
    } else {
    }
    %c0 = arith.constant 0 : index
    %c0_1 = arith.constant 0 : index
    %c0_2 = arith.constant 0 : index
    %3 = vector.load %arg3[%c0, %c0_1, %c0_2] : memref<8x8x32xf32, #tpu.memory_space<vmem>>, vector<8x8x32xf32>
    %c0_3 = arith.constant 0 : index
    %c0_4 = arith.constant 0 : index
    %4 = vector.load %arg8[%c0_3, %c0_4] : memref<8x32xf32, #tpu.memory_space<vmem>>, vector<8x32xf32>
    %cst = arith.constant dense<0.000000e+00> : vector<8x32xf32>
    %5 = vector.multi_reduction <add>, %3, %cst [1] : vector<8x8x32xf32> to vector<8x32xf32>
    %6 = arith.addf %4, %5 : vector<8x32xf32>
    %c0_5 = arith.constant 0 : index
    %c0_6 = arith.constant 0 : index
    %7 = vector.load %arg8[%c0_5, %c0_6] : memref<8x32xf32, #tpu.memory_space<vmem>>, vector<8x32xf32>
    tpu.vector_store %arg8[%c0_5, %c0_6], %6 {strides = array<i32>} : memref<8x32xf32, #tpu.memory_space<vmem>>, vector<8x32xf32>,
    %c0_i32_7 = arith.constant 0 : i32
    %8 = arith.cmpi eq, %arg1, %c0_i32_7 : i32
    %9 = arith.extui %8 : i1 to i32
    %c0_i32_8 = arith.constant 0 : i32
    %10 = arith.cmpi ne, %9, %c0_i32_8 : i32
    scf.if %10 {
      %c0_9 = arith.constant 0 : index
      %c0_10 = arith.constant 0 : index
      %11 = vector.load %arg2[%c0_9, %c0_10] : memref<8x32xf32, #tpu.memory_space<vmem>>, vector<8x32xf32>
      %c0_11 = arith.constant 0 : index
      %c0_12 = arith.constant 0 : index
      %12 = vector.load %arg4[%c0_11, %c0_12] : memref<128x32xf32, #tpu.memory_space<vmem>>, vector<128x32xf32>
      %cst_13 = arith.constant dense<0.000000e+00> : vector<8x128xf32>
      %13 = tpu.matmul %11, %12, %cst_13 {dimension_numbers = #tpu.dot_dimension_numbers<[1], [1], [0], [0], [0, 0, 1, 0], [], []>} : vector<8x32xf32>, vector<128x32xf32>, vector<8x128xf32> -> vector<8x128xf32>
      %c0_14 = arith.constant 0 : index
      %c0_15 = arith.constant 0 : index
      %14 = vector.load %arg8[%c0_14, %c0_15] : memref<8x32xf32, #tpu.memory_space<vmem>>, vector<8x32xf32>
      %c0_16 = arith.constant 0 : index
      %c0_17 = arith.constant 0 : index
      %15 = vector.load %arg5[%c0_16, %c0_17] : memref<128x32xf32, #tpu.memory_space<vmem>>, vector<128x32xf32>
      %cst_18 = arith.constant dense<0.000000e+00> : vector<8x128xf32>
      %16 = tpu.matmul %14, %15, %cst_18 {dimension_numbers = #tpu.dot_dimension_numbers<[1], [1], [0], [0], [0, 0, 1, 0], [], []>} : vector<8x32xf32>, vector<128x32xf32>, vector<8x128xf32> -> vector<8x128xf32>
      %17 = arith.addf %13, %16 : vector<8x128xf32>
      %c0_19 = arith.constant 0 : index
      %c0_20 = arith.constant 0 : index
      %18 = vector.load %arg6[%c0_19, %c0_20] : memref<1x128xf32, #tpu.memory_space<vmem>>, vector<1x128xf32>
      %19 = vector.broadcast %18 : vector<1x128xf32> to vector<8x128xf32>
      %20 = arith.addf %17, %19 : vector<8x128xf32>
      %c0_21 = arith.constant 0 : index
      %c0_22 = arith.constant 0 : index
      %21 = vector.load %arg7[%c0_21, %c0_22] : memref<8x128xf32, #tpu.memory_space<vmem>>, vector<8x128xf32>
      tpu.vector_store %arg7[%c0_21, %c0_22], %20 {strides = array<i32>} : memref<8x128xf32, #tpu.memory_space<vmem>>, vector<8x128xf32>,
    } else {
    }
    return
  }
  func.func @transform_0(%arg0: i32, %arg1: i32) -> (i32, i32) {
    %c0_i32 = arith.constant 0 : i32
    %c0_i32_0 = arith.constant 0 : i32
    return %arg0, %c0_i32 : i32, i32
  }
  func.func @transform_1(%arg0: i32, %arg1: i32) -> (i32, i32, i32) {
    %c0_i32 = arith.constant 0 : i32
    %c0_i32_0 = arith.constant 0 : i32
    return %arg0, %arg1, %c0_i32 : i32, i32, i32
  }
  func.func @transform_2(%arg0: i32, %arg1: i32) -> (i32, i32) {
    %c0_i32 = arith.constant 0 : i32
    %c0_i32_0 = arith.constant 0 : i32
    %c0_i32_1 = arith.constant 0 : i32
    return %c0_i32, %c0_i32_0 : i32, i32
  }
  func.func @transform_3(%arg0: i32, %arg1: i32) -> (i32, i32) {
    %c0_i32 = arith.constant 0 : i32
    %c0_i32_0 = arith.constant 0 : i32
    %c0_i32_1 = arith.constant 0 : i32
    return %c0_i32, %c0_i32_0 : i32, i32
  }
  func.func @transform_4(%arg0: i32, %arg1: i32) -> (i32, i32) {
    %c0_i32 = arith.constant 0 : i32
    %c0_i32_0 = arith.constant 0 : i32
    %c0_i32_1 = arith.constant 0 : i32
    return %c0_i32, %c0_i32_0 : i32, i32
  }
  func.func @transform_5(%arg0: i32, %arg1: i32) -> (i32, i32) {
    %c0_i32 = arith.constant 0 : i32
    %c0_i32_0 = arith.constant 0 : i32
    return %arg0, %c0_i32 : i32, i32
  }
}

</mosaic_0001>

<llo_original>
// kernel: tpu_custom_call.1
$region0: #{tpu_custom_call.1}
  #allocation0 [shape = 'u32[]', space=smem, size = 0x4, offset = 0x4, fixed_abs, tag = 'smem constant byte address 0x4 - core index']
  #allocation1 [shape = 'u32[144,128]{1,0:T(1,128)}', space=vmem, size = 0x12000, scoped, tag = 'internal scratch']
  #allocation2 [shape = 'f32[8,32]{1,0:T(8,128)}', space=vmem, size = 0x1000, scoped, tag = 'scratch operand']
  %s0 = inlined_call_operand.vmem [shape: f32[2,32], index: 0, kind: input, shape index: {}]
  %s1 = inlined_call_operand.vmem [shape: f32[2,8,32], index: 1, kind: input, shape index: {}]
  %s2 = inlined_call_operand.vmem [shape: f32[128,32], index: 2, kind: input, shape index: {}]
  %s3 = inlined_call_operand.vmem [shape: f32[128,32], index: 3, kind: input, shape index: {}]
  %s4 = inlined_call_operand.vmem [shape: f32[1,128], index: 4, kind: input, shape index: {}]
  %s5 = inlined_call_operand.hbm [shape: f32[2,128], index: 5, kind: output, shape index: {}]
  %s6 = sld [smem:[#allocation0]]
  $region38: #{tpu_custom_call.1} parent=0
    _
  %s8 = ssub.s32 1, %s6
  %s9 = scalar_select 0, %s8, %s6
  $region1: #{tpu_custom_call.1} parent=0
    #allocation3 [shape = 'u8[4096]{0}', space=vmem, size = 0x1000, scoped, tag = 'output window, operand 0, single buffered']
    #allocation4 [shape = 's32[1]{0}', space=sflag, size = 0x4, scoped, tag = 'scoped memory for tpu_custom_call.1']
    %10 = vsyncpa [#allocation4], 0
    // Predicated region
    $region2: #{tpu_custom_call.1} parent=1 // pred_check
      _
    $region3: #{tpu_custom_call.1} parent=1 // pred_check_branch
      %12 = sbr.rel (0) target = $region5
    $region4: #{tpu_custom_call.1} parent=1 // pred_region
      _
    $region5: #{tpu_custom_call.1} parent=1 // pred_fallthru
      _
    // Predicated region
    $region6: #{tpu_custom_call.1} parent=1 // pred_check
      _
    $region7: #{tpu_custom_call.1} parent=1 // pred_check_branch
      %14 = sbr.rel (0) target = $region9
    $region8: #{tpu_custom_call.1} parent=1 // pred_region
      _
    $region9: #{tpu_custom_call.1} parent=1 // pred_fallthru
      _
    // Predicated region
    $region10: #{tpu_custom_call.1} parent=1 // pred_check
      _
    $region11: #{tpu_custom_call.1} parent=1 // pred_check_branch
      %16 = sbr.rel (0) target = $region13
    $region12: #{tpu_custom_call.1} parent=1 // pred_region
      _
    $region13: #{tpu_custom_call.1} parent=1 // pred_fallthru
      _
    // Predicated region
    $region14: #{tpu_custom_call.1} parent=1 // pred_check
      _
    $region15: #{tpu_custom_call.1} parent=1 // pred_check_branch
      %18 = sbr.rel (0) target = $region17
    $region16: #{tpu_custom_call.1} parent=1 // pred_region
      _
    $region17: #{tpu_custom_call.1} parent=1 // pred_fallthru
      _
    // Predicated region
    $region18: #{tpu_custom_call.1} parent=1 // pred_check
      _
    $region19: #{tpu_custom_call.1} parent=1 // pred_check_branch
      %20 = sbr.rel (0) target = $region21
    $region20: #{tpu_custom_call.1} parent=1 // pred_region
      _
    $region21: #{tpu_custom_call.1} parent=1 // pred_fallthru
      _
    %p21 = scmp.eq.s32.totalorder 0, 0
    // Predicated region
    $region22: #{tpu_custom_call.1} parent=1 // pred_check
      %p22 = pneg %p21
    $region23: #{tpu_custom_call.1} parent=1 // pred_check_branch
      %24 = sbr.rel (%p22) target = $region25
    $region24: #{tpu_custom_call.1} parent=1 // pred_region
      %vm25 = vcmask 261120
      %26 = vst.msk [vmem:[#allocation2] sm:$0xff] %vm25, 0.0
    $region25: #{tpu_custom_call.1} parent=1 // pred_fallthru
      _
    %v27 = vld [vmem:[%s1] sm:$0xff]
    %v28 = vld [vmem:[%s1 + $0x8] sm:$0xff]
    %v29 = vld [vmem:[%s1 + $0x10] sm:$0xff]
    %v30 = vld [vmem:[%s1 + $0x18] sm:$0xff]
    %v31 = vld [vmem:[%s1 + $0x20] sm:$0xff]
    %v32 = vld [vmem:[%s1 + $0x28] sm:$0xff]
    %v33 = vld [vmem:[%s1 + $0x30] sm:$0xff]
    %v34 = vld [vmem:[%s1 + $0x38] sm:$0xff]
    %v35 = vld [vmem:[#allocation2] sm:$0xff]
    %vm36 = vcmask 261120
    %v37 = vsel %vm36, %v27, 0.0
    %v38 = vrot.slane %v37, 4
    %v39 = vadd.f32 %v37, %v38
    %v40 = vrot.slane %v39, 2
    %v41 = vadd.f32 %v39, %v40
    %v42 = vrot.slane %v41, 1
    %v43 = vadd.f32 %v41, %v42
    %v44 = vsel %vm36, %v28, 0.0
    %v45 = vrot.slane %v44, 4
    %v46 = vadd.f32 %v44, %v45
    %v47 = vrot.slane %v46, 2
    %v48 = vadd.f32 %v46, %v47
    %v49 = vrot.slane %v48, 1
    %v50 = vadd.f32 %v48, %v49
    %v51 = vsel %vm36, %v29, 0.0
    %v52 = vrot.slane %v51, 4
    %v53 = vadd.f32 %v51, %v52
    %v54 = vrot.slane %v53, 2
    %v55 = vadd.f32 %v53, %v54
    %v56 = vrot.slane %v55, 1
    %v57 = vadd.f32 %v55, %v56
    %v58 = vsel %vm36, %v30, 0.0
    %v59 = vrot.slane %v58, 4
    %v60 = vadd.f32 %v58, %v59
    %v61 = vrot.slane %v60, 2
    %v62 = vadd.f32 %v60, %v61
    %v63 = vrot.slane %v62, 1
    %v64 = vadd.f32 %v62, %v63
    %v65 = vsel %vm36, %v31, 0.0
    %v66 = vrot.slane %v65, 4
    %v67 = vadd.f32 %v65, %v66
    %v68 = vrot.slane %v67, 2
    %v69 = vadd.f32 %v67, %v68
    %v70 = vrot.slane %v69, 1
    %v71 = vadd.f32 %v69, %v70
    %v72 = vsel %vm36, %v32, 0.0
    %v73 = vrot.slane %v72, 4
    %v74 = vadd.f32 %v72, %v73
    %v75 = vrot.slane %v74, 2
    %v76 = vadd.f32 %v74, %v75
    %v77 = vrot.slane %v76, 1
    %v78 = vadd.f32 %v76, %v77
    %v79 = vsel %vm36, %v33, 0.0
    %v80 = vrot.slane %v79, 4
    %v81 = vadd.f32 %v79, %v80
    %v82 = vrot.slane %v81, 2
    %v83 = vadd.f32 %v81, %v82
    %v84 = vrot.slane %v83, 1
    %v85 = vadd.f32 %v83, %v84
    %v86 = vsel %vm36, %v34, 0.0
    %v87 = vrot.slane %v86, 4
    %v88 = vadd.f32 %v86, %v87
    %v89 = vrot.slane %v88, 2
    %v90 = vadd.f32 %v88, %v89
    %v91 = vrot.slane %v90, 1
    %v92 = vadd.f32 %v90, %v91
    %vm101 = vcmask 1041409
    %v102 = vsel %vm101, %v50, %v43
    %vm103 = vcmask 1042434
    %v104 = vsel %vm103, %v57, %v102
    %vm105 = vcmask 1043459
    %v106 = vsel %vm105, %v64, %v104
    %vm107 = vcmask 1044484
    %v108 = vsel %vm107, %v71, %v106
    %vm109 = vcmask 1045509
    %v110 = vsel %vm109, %v78, %v108
    %vm111 = vcmask 1046534
    %v112 = vsel %vm111, %v85, %v110
    %vm113 = vcmask 1047559
    %v114 = vsel %vm113, %v92, %v112
    %v116 = vadd.f32 %v35, %v114
    %117 = vst.msk [vmem:[#allocation2] sm:$0xff] %vm36, %v116
    // Predicated region
    $region26: #{tpu_custom_call.1} parent=1 // pred_check
      %p118 = pneg %p21
    $region27: #{tpu_custom_call.1} parent=1 // pred_check_branch
      %120 = sbr.rel (%p118) target = $region29
    $region28: #{tpu_custom_call.1} parent=1 // pred_region
      %v121 = vld [vmem:[%s0] sm:$0xff]
      %v122 = vld [vmem:[%s2] sm:$0xff]
      %v123 = vld [vmem:[%s2 + $0x8] sm:$0xff]
      %v124 = vld [vmem:[%s2 + $0x10] sm:$0xff]
      %v125 = vld [vmem:[%s2 + $0x18] sm:$0xff]
      %v126 = vld [vmem:[%s2 + $0x20] sm:$0xff]
      %v127 = vld [vmem:[%s2 + $0x28] sm:$0xff]
      %v128 = vld [vmem:[%s2 + $0x30] sm:$0xff]
      %v129 = vld [vmem:[%s2 + $0x38] sm:$0xff]
      %v130 = vld [vmem:[%s2 + $0x40] sm:$0xff]
      %v131 = vld [vmem:[%s2 + $0x48] sm:$0xff]
      %v132 = vld [vmem:[%s2 + $0x50] sm:$0xff]
      %v133 = vld [vmem:[%s2 + $0x58] sm:$0xff]
      %v134 = vld [vmem:[%s2 + $0x60] sm:$0xff]
      %v135 = vld [vmem:[%s2 + $0x68] sm:$0xff]
      %v136 = vld [vmem:[%s2 + $0x70] sm:$0xff]
      %v137 = vld [vmem:[%s2 + $0x78] sm:$0xff]
      %v138 = vld [vmem:[#allocation2] sm:$0xff]
      %v139 = vld [vmem:[%s3] sm:$0xff]
      %v140 = vld [vmem:[%s3 + $0x8] sm:$0xff]
      %v141 = vld [vmem:[%s3 + $0x10] sm:$0xff]
      %v142 = vld [vmem:[%s3 + $0x18] sm:$0xff]
      %v143 = vld [vmem:[%s3 + $0x20] sm:$0xff]
      %v144 = vld [vmem:[%s3 + $0x28] sm:$0xff]
      %v145 = vld [vmem:[%s3 + $0x30] sm:$0xff]
      %v146 = vld [vmem:[%s3 + $0x38] sm:$0xff]
      %v147 = vld [vmem:[%s3 + $0x40] sm:$0xff]
      %v148 = vld [vmem:[%s3 + $0x48] sm:$0xff]
      %v149 = vld [vmem:[%s3 + $0x50] sm:$0xff]
      %v150 = vld [vmem:[%s3 + $0x58] sm:$0xff]
      %v151 = vld [vmem:[%s3 + $0x60] sm:$0xff]
      %v152 = vld [vmem:[%s3 + $0x68] sm:$0xff]
      %v153 = vld [vmem:[%s3 + $0x70] sm:$0xff]
      %v154 = vld [vmem:[%s3 + $0x78] sm:$0xff]
      %v156 = vsel %vm36, %v138, 0
      %v159 = vsel %vm36, %v139, 0
      %v162 = vsel %vm36, %v140, 0
      %v165 = vsel %vm36, %v141, 0
      %v168 = vsel %vm36, %v142, 0
      %v171 = vsel %vm36, %v143, 0
      %v174 = vsel %vm36, %v144, 0
      %v177 = vsel %vm36, %v145, 0
      %v180 = vsel %vm36, %v146, 0
      %v183 = vsel %vm36, %v147, 0
      %v186 = vsel %vm36, %v148, 0
      %v189 = vsel %vm36, %v149, 0
      %v192 = vsel %vm36, %v150, 0
      %v195 = vsel %vm36, %v151, 0
      %v198 = vsel %vm36, %v152, 0
      %v201 = vsel %vm36, %v153, 0
      %v204 = vsel %vm36, %v154, 0
      %206 = vmatprep.subr.mxu0 0.0
      %207 = vmatpush1.xpose.msra.mxu0 %v159
      %208 = vmatprep.subr.mxu0 0.0
      %209 = vmatpush1.xpose.msra.mxu0 %v162
      %210 = vmatprep.subr.mxu0 0.0
      %211 = vmatpush1.xpose.msra.mxu0 %v165
      %212 = vmatprep.subr.mxu0 0.0
      %213 = vmatpush1.xpose.msra.mxu0 %v168
      %214 = vmatprep.subr.mxu0 0.0
      %215 = vmatpush1.xpose.msra.mxu0 %v171
      %216 = vmatprep.subr.mxu0 0.0
      %217 = vmatpush1.xpose.msra.mxu0 %v174
      %218 = vmatprep.subr.mxu0 0.0
      %219 = vmatpush1.xpose.msra.mxu0 %v177
      %220 = vmatprep.subr.mxu0 0.0
      %221 = vmatpush1.xpose.msra.mxu0 %v180
      %222 = vmatprep.subr.mxu0 0.0
      %223 = vmatpush1.xpose.msra.mxu0 %v183
      %224 = vmatprep.subr.mxu0 0.0
      %225 = vmatpush1.xpose.msra.mxu0 %v186
      %226 = vmatprep.subr.mxu0 0.0
      %227 = vmatpush1.xpose.msra.mxu0 %v189
      %228 = vmatprep.subr.mxu0 0.0
      %229 = vmatpush1.xpose.msra.mxu0 %v192
      %230 = vmatprep.subr.mxu0 0.0
      %231 = vmatpush1.xpose.msra.mxu0 %v195
      %232 = vmatprep.subr.mxu0 0.0
      %233 = vmatpush1.xpose.msra.mxu0 %v198
      %234 = vmatprep.subr.mxu0 0.0
      %235 = vmatpush1.xpose.msra.mxu0 %v201
      %236 = vmatprep.subr.mxu0 0.0
      %237 = vmatpush1.xpose.msra.mxu0 %v204
      %238 = vmatprep.subr.mxu0 0.0
      %239 = vmatpush1.xpose.msra.mxu0 0.0
      %240 = vmatprep.subr.mxu0 0.0
      %241 = vmatpush1.xpose.msra.mxu0 0.0
      %242 = vmatprep.subr.mxu0 0.0
      %243 = vmatpush1.xpose.msra.mxu0 0.0
      %244 = vmatprep.subr.mxu0 0.0
      %245 = vmatpush1.xpose.msra.mxu0 0.0
      %246 = vmatprep.subr.mxu0 0.0
      %247 = vmatpush1.xpose.msra.mxu0 0.0
      %248 = vmatprep.subr.mxu0 0.0
      %249 = vmatpush1.xpose.msra.mxu0 0.0
      %250 = vmatprep.subr.mxu0 0.0
      %251 = vmatpush1.xpose.msra.mxu0 0.0
      %252 = vmatprep.subr.mxu0 0.0
      %253 = vmatpush1.xpose.msra.mxu0 0.0
      %254 = vmatprep.subr.mxu0 0.0
      %255 = vmatpush1.xpose.msra.mxu0 0.0
      %256 = vmatprep.subr.mxu0 0.0
      %257 = vmatpush1.xpose.msra.mxu0 0.0
      %258 = vmatprep.subr.mxu0 0.0
      %259 = vmatpush1.xpose.msra.mxu0 0.0
      %260 = vmatprep.subr.mxu0 0.0
      %261 = vmatpush1.xpose.msra.mxu0 0.0
      %262 = vmatprep.subr.mxu0 0.0
      %263 = vmatpush1.xpose.msra.mxu0 0.0
      %264 = vmatprep.subr.mxu0 0.0
      %265 = vmatpush1.xpose.msra.mxu0 0.0
      %266 = vmatprep.subr.mxu0 0.0
      %267 = vmatpush1.xpose.msra.mxu0 0.0
      %268 = vmatprep.subr.mxu0 0.0
      %269 = vmatpush1.xpose.msra.mxu0 0.0
      %270 = vmatprep.mubr.f32.mxu0 0.0
      %271 = vmatmul.mubr.f32.gmra.mrb[0].mxu0 %v156
      %v272 = vpop.f32.mrb[0].mxu0
      %v273 = vadd.f32 0.0, %v272
      %v274 = vpop.f32.mrb[0].mxu0
      %275 = vdwg.mxu0
      %v277 = vsel %vm36, %v121, 0
      %v280 = vsel %vm36, %v122, 0
      %v283 = vsel %vm36, %v123, 0
      %v286 = vsel %vm36, %v124, 0
      %v289 = vsel %vm36, %v125, 0
      %v292 = vsel %vm36, %v126, 0
      %v295 = vsel %vm36, %v127, 0
      %v298 = vsel %vm36, %v128, 0
      %v301 = vsel %vm36, %v129, 0
      %v304 = vsel %vm36, %v130, 0
      %v307 = vsel %vm36, %v131, 0
      %v310 = vsel %vm36, %v132, 0
      %v313 = vsel %vm36, %v133, 0
      %v316 = vsel %vm36, %v134, 0
      %v319 = vsel %vm36, %v135, 0
      %v322 = vsel %vm36, %v136, 0
      %v325 = vsel %vm36, %v137, 0
      %327 = vmatprep.subr.mxu0 0.0
      %328 = vmatpush1.xpose.msra.mxu0 %v280
      %329 = vmatprep.subr.mxu0 0.0
      %330 = vmatpush1.xpose.msra.mxu0 %v283
      %331 = vmatprep.subr.mxu0 0.0
      %332 = vmatpush1.xpose.msra.mxu0 %v286
      %333 = vmatprep.subr.mxu0 0.0
      %334 = vmatpush1.xpose.msra.mxu0 %v289
      %335 = vmatprep.subr.mxu0 0.0
      %336 = vmatpush1.xpose.msra.mxu0 %v292
      %337 = vmatprep.subr.mxu0 0.0
      %338 = vmatpush1.xpose.msra.mxu0 %v295
      %339 = vmatprep.subr.mxu0 0.0
      %340 = vmatpush1.xpose.msra.mxu0 %v298
      %341 = vmatprep.subr.mxu0 0.0
      %342 = vmatpush1.xpose.msra.mxu0 %v301
      %343 = vmatprep.subr.mxu0 0.0
      %344 = vmatpush1.xpose.msra.mxu0 %v304
      %345 = vmatprep.subr.mxu0 0.0
      %346 = vmatpush1.xpose.msra.mxu0 %v307
      %347 = vmatprep.subr.mxu0 0.0
      %348 = vmatpush1.xpose.msra.mxu0 %v310
      %349 = vmatprep.subr.mxu0 0.0
      %350 = vmatpush1.xpose.msra.mxu0 %v313
      %351 = vmatprep.subr.mxu0 0.0
      %352 = vmatpush1.xpose.msra.mxu0 %v316
      %353 = vmatprep.subr.mxu0 0.0
      %354 = vmatpush1.xpose.msra.mxu0 %v319
      %355 = vmatprep.subr.mxu0 0.0
      %356 = vmatpush1.xpose.msra.mxu0 %v322
      %357 = vmatprep.subr.mxu0 0.0
      %358 = vmatpush1.xpose.msra.mxu0 %v325
      %359 = vmatprep.subr.mxu0 0.0
      %360 = vmatpush1.xpose.msra.mxu0 0.0
      %361 = vmatprep.subr.mxu0 0.0
      %362 = vmatpush1.xpose.msra.mxu0 0.0
      %363 = vmatprep.subr.mxu0 0.0
      %364 = vmatpush1.xpose.msra.mxu0 0.0
      %365 = vmatprep.subr.mxu0 0.0
      %366 = vmatpush1.xpose.msra.mxu0 0.0
      %367 = vmatprep.subr.mxu0 0.0
      %368 = vmatpush1.xpose.msra.mxu0 0.0
      %369 = vmatprep.subr.mxu0 0.0
      %370 = vmatpush1.xpose.msra.mxu0 0.0
      %371 = vmatprep.subr.mxu0 0.0
      %372 = vmatpush1.xpose.msra.mxu0 0.0
      %373 = vmatprep.subr.mxu0 0.0
      %374 = vmatpush1.xpose.msra.mxu0 0.0
      %375 = vmatprep.subr.mxu0 0.0
      %376 = vmatpush1.xpose.msra.mxu0 0.0
      %377 = vmatprep.subr.mxu0 0.0
      %378 = vmatpush1.xpose.msra.mxu0 0.0
      %379 = vmatprep.subr.mxu0 0.0
      %380 = vmatpush1.xpose.msra.mxu0 0.0
      %381 = vmatprep.subr.mxu0 0.0
      %382 = vmatpush1.xpose.msra.mxu0 0.0
      %383 = vmatprep.subr.mxu0 0.0
      %384 = vmatpush1.xpose.msra.mxu0 0.0
      %385 = vmatprep.subr.mxu0 0.0
      %386 = vmatpush1.xpose.msra.mxu0 0.0
      %387 = vmatprep.subr.mxu0 0.0
      %388 = vmatpush1.xpose.msra.mxu0 0.0
      %389 = vmatprep.subr.mxu0 0.0
      %390 = vmatpush1.xpose.msra.mxu0 0.0
      %391 = vmatprep.mubr.f32.mxu0 0.0
      %392 = vmatmul.mubr.f32.gmra.mrb[0].mxu0 %v277
      %v393 = vpop.f32.mrb[0].mxu0
      %v394 = vadd.f32 %v273, %v393
      %v395 = vpop.f32.mrb[0].mxu0
      %396 = vdwg.mxu0
      %v397 = vld [vmem:[%s4] sm:$0x1]
      %v399 = vlaneseq
      %v400 = vshrl.u32 %v399, 7
      %v401 = vsub.s32 0, %v400
      %v402 = vrot.slane %v397, %v401
      %v404 = vadd.f32 %v394, %v402
      %405 = vst [vmem:[#allocation3] sm:$0xff] %v404
    $region29: #{tpu_custom_call.1} parent=1 // pred_fallthru
      _
    // Predicated region
    $region30: #{tpu_custom_call.1} parent=1 // pred_check
      _
    $region31: #{tpu_custom_call.1} parent=1 // pred_check_branch
      %407 = sbr.rel (0) target = $region33
    $region32: #{tpu_custom_call.1} parent=1 // pred_region
      %s409 = ssub.s32 128, 32
      %410 = vsyncadd [#allocation4], %s409
      %s411 = sshll.u32 [#allocation3], 4
      %s412 = int_to_ptr.vmem [resolvable:$true] %s411
      %417 = dma.vmem_to_hbm [thread:$0]  %s412, 32, %s5, [#allocation4], 32, 32, 2
    $region33: #{tpu_custom_call.1} parent=1 // pred_fallthru
      _
    // Predicated region
    $region34: #{tpu_custom_call.1} parent=1 // pred_check
      _
    $region35: #{tpu_custom_call.1} parent=1 // pred_check_branch
      %419 = sbr.rel (0) target = $region37
    $region36: #{tpu_custom_call.1} parent=1 // pred_region
      %420 = dma.done [#allocation4], 128
    $region37: #{tpu_custom_call.1} parent=1 // pred_fallthru
      _
    %421 = vsyncpa [#allocation4], 1

</llo_original>
